<compile_context>
chip_gen: v7x
topology: tpu7x:2x2x1
jax: 0.10.0
libtpu: 0.0.40
codegen_flags: <defaults>
</compile_context>

<pallas_src>
import functools

import jax
import jax.numpy as jnp
from jax.experimental import pallas as pl
from jax.experimental.pallas import tpu as pltpu

EPS = 1e-5


def _round_up(a, b):
    return ((a + b - 1) // b) * b


def _ln_packed_kernel(x_ref, w_ref, e_ref, o_ref, *, c):
    """Lane-packed path: k = 128 // C original rows per block row (L = k*C = 128).

    e_ref is an (L, L) block-diagonal ones matrix; X @ E gives each lane the sum of
    its own C-wide segment (i.e. its original row), broadcast across that segment.
    """
    x = x_ref[...].astype(jnp.float32)            # (tile_m, L)
    w = w_ref[...].astype(jnp.float32)            # (1, L)  weight tiled k times
    e = e_ref[...]                                # (L, L) f32 segment matrix
    s1 = jnp.dot(x, e, preferred_element_type=jnp.float32)        # per-row sums
    s2 = jnp.dot(x * x, e, preferred_element_type=jnp.float32)    # per-row sum of squares
    inv_c = 1.0 / c
    mean = s1 * inv_c
    var = jnp.maximum(s2 * inv_c - mean * mean, 0.0)   # one-pass var, clamp cancellation
    inv = jax.lax.rsqrt(var + EPS)
    o_ref[...] = (x * (inv * w)).astype(o_ref.dtype)


def _ln_rows_kernel(x_ref, w_ref, o_ref, *, c):
    """General path: one original row per block row, reduce over the last axis."""
    x = x_ref[...].astype(jnp.float32)            # (tile_n, C)
    w = w_ref[...].astype(jnp.float32)            # (1, C)
    inv_c = 1.0 / c
    s1 = jnp.sum(x, axis=-1, keepdims=True)
    s2 = jnp.sum(x * x, axis=-1, keepdims=True)
    mean = s1 * inv_c
    var = jnp.maximum(s2 * inv_c - mean * mean, 0.0)
    inv = jax.lax.rsqrt(var + EPS)
    o_ref[...] = (x * (inv * w)).astype(o_ref.dtype)


def biasfree_layernorm(x, weight, *, target_block_bytes=1 << 20,
                       vmem_limit_bytes=32 * 1024 * 1024):
    """x: (..., C); weight: (C,). Returns same shape/dtype as x."""
    orig_shape = x.shape
    C = orig_shape[-1]
    x2 = x.reshape(-1, C)
    N = x2.shape[0]
    w2 = weight.reshape(1, C)
    itemsize = jnp.dtype(x.dtype).itemsize

    compiler_params = pltpu.CompilerParams(
        dimension_semantics=("parallel",),
        vmem_limit_bytes=vmem_limit_bytes,
    )

    if C < 128 and 128 % C == 0:
        # ---- lane-packed path: pack k rows into the 128-wide lane axis ----
        k = 128 // C
        L = k * C                                   # == 128
        M = pl.cdiv(N, k)                           # packed rows
        tile_m = max(8, (target_block_bytes // (L * itemsize)) // 8 * 8)
        tile_m = min(tile_m, _round_up(M, 8))
        M_pad = _round_up(M, tile_m)
        N_pad = M_pad * k
        if N_pad != N:
            x2 = jnp.pad(x2, ((0, N_pad - N), (0, 0)))
        xp = x2.reshape(M_pad, L)                   # free row-major reshape

        w_tiled = jnp.tile(w2, (1, k))              # (1, L): weight[j % C]
        seg = jnp.arange(L, dtype=jnp.int32) // C
        e = (seg[:, None] == seg[None, :]).astype(jnp.float32)   # (L, L) block-diag ones

        out = pl.pallas_call(
            functools.partial(_ln_packed_kernel, c=float(C)),
            out_shape=jax.ShapeDtypeStruct((M_pad, L), x.dtype),
            grid_spec=pltpu.PrefetchScalarGridSpec(
                num_scalar_prefetch=0,
                grid=(M_pad // tile_m,),
                in_specs=[
                    pl.BlockSpec((tile_m, L), lambda i: (i, 0)),
                    pl.BlockSpec((1, L), lambda i: (0, 0)),      # weight stays resident
                    pl.BlockSpec((L, L), lambda i: (0, 0)),      # segment matrix resident
                ],
                out_specs=pl.BlockSpec((tile_m, L), lambda i: (i, 0)),
            ),
            compiler_params=compiler_params,
        )(xp, w_tiled, e)
        out = out.reshape(N_pad, C)[:N]
    else:
        # ---- general path: full C on the lane axis, big row tiles ----
        tile_n = max(8, (target_block_bytes // (C * itemsize)) // 8 * 8)
        tile_n = min(tile_n, _round_up(N, 8))
        N_pad = _round_up(N, tile_n)
        if N_pad != N:
            x2 = jnp.pad(x2, ((0, N_pad - N), (0, 0)))

        out = pl.pallas_call(
            functools.partial(_ln_rows_kernel, c=float(C)),
            out_shape=jax.ShapeDtypeStruct((N_pad, C), x.dtype),
            grid_spec=pltpu.PrefetchScalarGridSpec(
                num_scalar_prefetch=0,
                grid=(N_pad // tile_n,),
                in_specs=[
                    pl.BlockSpec((tile_n, C), lambda i: (i, 0)),
                    pl.BlockSpec((1, C), lambda i: (0, 0)),
                ],
                out_specs=pl.BlockSpec((tile_n, C), lambda i: (i, 0)),
            ),
            compiler_params=compiler_params,
        )(x2, w2)
        out = out[:N]

    return out.reshape(orig_shape)


def _reference(x, weight):
    mu = jnp.mean(x, axis=-1, keepdims=True)
    var = jnp.mean((x - mu) ** 2, axis=-1, keepdims=True)
    return x / jnp.sqrt(var + EPS) * weight


if __name__ == "__main__":
    key = jax.random.PRNGKey(0)
    k1, k2, k3, k4 = jax.random.split(key, 4)

    # Test 1: C divides 128 -> lane-packed path (Restormer-like hidden dim).
    B, S, C = 2, 8, 32
    x = jax.random.normal(k1, (B, S, C), dtype=jnp.float32)
    weight = 1.0 + 0.1 * jax.random.normal(k2, (C,), dtype=jnp.float32)
    y = jax.block_until_ready(biasfree_layernorm(x, weight))
    y_ref = _reference(x, weight)
    assert jnp.allclose(y, y_ref, atol=1e-5, rtol=1e-5), "packed-path mismatch vs reference"

    # Test 2: C does not divide 128 -> general per-row path.
    B2, S2, C2 = 2, 4, 48
    x2 = jax.random.normal(k3, (B2, S2, C2), dtype=jnp.float32)
    weight2 = 1.0 + 0.1 * jax.random.normal(k4, (C2,), dtype=jnp.float32)
    y2 = jax.block_until_ready(biasfree_layernorm(x2, weight2))
    y2_ref = _reference(x2, weight2)
    assert jnp.allclose(y2, y2_ref, atol=1e-5, rtol=1e-5), "rows-path mismatch vs reference"

    print("KERNEL_OK")
</pallas_src>

<mosaic_0001>
module attributes {stable_mosaic.version = 11 : i64} {
  func.func @_ln_packed_kernel(%arg0: i32, %arg1: memref<8x128xf32, #tpu.memory_space<vmem>>, %arg2: memref<1x128xf32, #tpu.memory_space<vmem>>, %arg3: memref<128x128xf32, #tpu.memory_space<vmem>>, %arg4: memref<8x128xf32, #tpu.memory_space<vmem>>) attributes {dimension_semantics = [#tpu.dimension_semantics<parallel>], iteration_bounds = array<i64: 1>, scalar_prefetch = 0 : i64, scratch_operands = 0 : i64, tpu.core_type = #tpu.core_type<tc>, window_params = [{transform_indices = @transform_0, window_bounds = array<i64: 8, 128>}, {pipeline_mode = #tpu.pipeline_mode<synchronous>, transform_indices = @transform_1, window_bounds = array<i64: 1, 128>}, {pipeline_mode = #tpu.pipeline_mode<synchronous>, transform_indices = @transform_2, window_bounds = array<i64: 128, 128>}, {transform_indices = @transform_3, window_bounds = array<i64: 8, 128>}]} {
    %c0 = arith.constant 0 : index
    %c0_0 = arith.constant 0 : index
    %0 = vector.load %arg1[%c0, %c0_0] : memref<8x128xf32, #tpu.memory_space<vmem>>, vector<8x128xf32>
    %c0_1 = arith.constant 0 : index
    %c0_2 = arith.constant 0 : index
    %1 = vector.load %arg2[%c0_1, %c0_2] : memref<1x128xf32, #tpu.memory_space<vmem>>, vector<1x128xf32>
    %c0_3 = arith.constant 0 : index
    %c0_4 = arith.constant 0 : index
    %2 = vector.load %arg3[%c0_3, %c0_4] : memref<128x128xf32, #tpu.memory_space<vmem>>, vector<128x128xf32>
    %cst = arith.constant dense<0.000000e+00> : vector<8x128xf32>
    %3 = tpu.matmul %0, %2, %cst {dimension_numbers = #tpu.dot_dimension_numbers<[1], [0], [0], [1], [0, 0, 1, 1], [], []>} : vector<8x128xf32>, vector<128x128xf32>, vector<8x128xf32> -> vector<8x128xf32>
    %4 = arith.mulf %0, %0 : vector<8x128xf32>
    %cst_5 = arith.constant dense<0.000000e+00> : vector<8x128xf32>
    %5 = tpu.matmul %4, %2, %cst_5 {dimension_numbers = #tpu.dot_dimension_numbers<[1], [0], [0], [1], [0, 0, 1, 1], [], []>} : vector<8x128xf32>, vector<128x128xf32>, vector<8x128xf32> -> vector<8x128xf32>
    %cst_6 = arith.constant 3.125000e-02 : f32
    %6 = vector.broadcast %cst_6 : f32 to vector<8x128xf32>
    %7 = arith.mulf %3, %6 : vector<8x128xf32>
    %cst_7 = arith.constant 3.125000e-02 : f32
    %8 = vector.broadcast %cst_7 : f32 to vector<8x128xf32>
    %9 = arith.mulf %5, %8 : vector<8x128xf32>
    %10 = arith.mulf %7, %7 : vector<8x128xf32>
    %11 = arith.subf %9, %10 : vector<8x128xf32>
    %cst_8 = arith.constant 0.000000e+00 : f32
    %12 = vector.broadcast %cst_8 : f32 to vector<8x128xf32>
    %13 = arith.maximumf %11, %12 : vector<8x128xf32>
    %cst_9 = arith.constant 9.99999974E-6 : f32
    %14 = vector.broadcast %cst_9 : f32 to vector<8x128xf32>
    %15 = arith.addf %13, %14 : vector<8x128xf32>
    %16 = math.rsqrt %15 : vector<8x128xf32>
    %17 = vector.broadcast %1 : vector<1x128xf32> to vector<8x128xf32>
    %18 = arith.mulf %16, %17 : vector<8x128xf32>
    %19 = arith.mulf %0, %18 : vector<8x128xf32>
    %c0_10 = arith.constant 0 : index
    %c0_11 = arith.constant 0 : index
    %20 = vector.load %arg4[%c0_10, %c0_11] : memref<8x128xf32, #tpu.memory_space<vmem>>, vector<8x128xf32>
    tpu.vector_store %arg4[%c0_10, %c0_11], %19 {strides = array<i32>} : memref<8x128xf32, #tpu.memory_space<vmem>>, vector<8x128xf32>,
    return
  }
  func.func @transform_0(%arg0: i32) -> (i32, i32) {
    %c0_i32 = arith.constant 0 : i32
    %c0_i32_0 = arith.constant 0 : i32
    return %arg0, %c0_i32 : i32, i32
  }
  func.func @transform_1(%arg0: i32) -> (i32, i32) {
    %c0_i32 = arith.constant 0 : i32
    %c0_i32_0 = arith.constant 0 : i32
    %c0_i32_1 = arith.constant 0 : i32
    return %c0_i32, %c0_i32_0 : i32, i32
  }
  func.func @transform_2(%arg0: i32) -> (i32, i32) {
    %c0_i32 = arith.constant 0 : i32
    %c0_i32_0 = arith.constant 0 : i32
    %c0_i32_1 = arith.constant 0 : i32
    return %c0_i32, %c0_i32_0 : i32, i32
  }
  func.func @transform_3(%arg0: i32) -> (i32, i32) {
    %c0_i32 = arith.constant 0 : i32
    %c0_i32_0 = arith.constant 0 : i32
    return %arg0, %c0_i32 : i32, i32
  }
}

</mosaic_0001>

<llo_original>
// kernel: tpu_custom_call.1
$region0: #{tpu_custom_call.1}
  #allocation0 [shape = 'u32[]', space=smem, size = 0x4, offset = 0x4, fixed_abs, tag = 'smem constant byte address 0x4 - core index']
  #allocation1 [shape = 'u32[144,128]{1,0:T(1,128)}', space=vmem, size = 0x12000, scoped, tag = 'internal scratch']
  %s0 = inlined_call_operand.hbm [shape: f32[8,128], index: 0, kind: input, shape index: {}]
  %s1 = inlined_call_operand.vmem [shape: f32[1,128], index: 1, kind: input, shape index: {}]
  %s2 = inlined_call_operand.hbm [shape: f32[128,128], index: 2, kind: input, shape index: {}]
  %s3 = inlined_call_operand.hbm [shape: f32[8,128], index: 3, kind: output, shape index: {}]
  %s4 = sld [smem:[#allocation0]]
  $region30: #{tpu_custom_call.1} parent=0
    _
  %s6 = ssub.s32 1, %s4
  %s7 = scalar_select 0, %s6, %s4
  $region1: #{tpu_custom_call.1} parent=0
    #allocation2 [shape = 'u8[4096]{0}', space=vmem, size = 0x1000, scoped, tag = 'input window, operand 0, single buffered']
    #allocation3 [shape = 's32[1]{0}', space=sflag, size = 0x4, scoped, tag = 'scoped memory for tpu_custom_call.1']
    #allocation4 [shape = 's32[1]{0}', space=sflag, size = 0x4, scoped, tag = 'scoped memory for tpu_custom_call.1']
    #allocation5 [shape = 'u8[65536]{0}', space=vmem, size = 0x10000, scoped, tag = 'input window, operand 2, single buffered']
    #allocation6 [shape = 's32[1]{0}', space=sflag, size = 0x4, scoped, tag = 'scoped memory for tpu_custom_call.1']
    #allocation7 [shape = 'u8[4096]{0}', space=vmem, size = 0x1000, scoped, tag = 'output window, operand 0, single buffered']
    %8 = vsyncpa [#allocation3], 0
    %9 = vsyncpa [#allocation6], 0
    %10 = vsyncpa [#allocation4], 0
    // Predicated region
    $region2: #{tpu_custom_call.1} parent=1 // pred_check
      _
    $region3: #{tpu_custom_call.1} parent=1 // pred_check_branch
      %12 = sbr.rel (0) target = $region5
    $region4: #{tpu_custom_call.1} parent=1 // pred_region
      %s14 = ssub.s32 128, 128
      %15 = vsyncadd [#allocation3], %s14
      %s17 = sshll.u32 [#allocation2], 4
      %s18 = int_to_ptr.vmem [resolvable:$true] %s17
      %20 = dma.hbm_to_vmem [thread:$0]  %s0, 128, %s18, [#allocation3]
    $region5: #{tpu_custom_call.1} parent=1 // pred_fallthru
      _
    // Predicated region
    $region6: #{tpu_custom_call.1} parent=1 // pred_check
      _
    $region7: #{tpu_custom_call.1} parent=1 // pred_check_branch
      %22 = sbr.rel (0) target = $region9
    $region8: #{tpu_custom_call.1} parent=1 // pred_region
      _
    $region9: #{tpu_custom_call.1} parent=1 // pred_fallthru
      _
    // Predicated region
    $region10: #{tpu_custom_call.1} parent=1 // pred_check
      _
    $region11: #{tpu_custom_call.1} parent=1 // pred_check_branch
      %24 = sbr.rel (0) target = $region13
    $region12: #{tpu_custom_call.1} parent=1 // pred_region
      %s26 = ssub.s32 2048, 2048
      %27 = vsyncadd [#allocation6], %s26
      %s28 = sshll.u32 [#allocation5], 4
      %s29 = int_to_ptr.vmem [resolvable:$true] %s28
      %34 = dma.hbm_to_vmem [thread:$0]  %s2, 2048, %s29, [#allocation6], 128, 128, 8
    $region13: #{tpu_custom_call.1} parent=1 // pred_fallthru
      _
    // Predicated region
    $region14: #{tpu_custom_call.1} parent=1 // pred_check
      _
    $region15: #{tpu_custom_call.1} parent=1 // pred_check_branch
      %36 = sbr.rel (0) target = $region17
    $region16: #{tpu_custom_call.1} parent=1 // pred_region
      %37 = dma.done [#allocation3], 128
    $region17: #{tpu_custom_call.1} parent=1 // pred_fallthru
      _
    // Predicated region
    $region18: #{tpu_custom_call.1} parent=1 // pred_check
      _
    $region19: #{tpu_custom_call.1} parent=1 // pred_check_branch
      %39 = sbr.rel (0) target = $region21
    $region20: #{tpu_custom_call.1} parent=1 // pred_region
      %40 = dma.done [#allocation6], 2048
    $region21: #{tpu_custom_call.1} parent=1 // pred_fallthru
      _
    %v41 = vld [vmem:[#allocation2] sm:$0xff]
    %v42 = vld [vmem:[%s1] sm:$0x1]
    %v43 = vld [vmem:[#allocation5] sm:$0xff]
    %v44 = vld [vmem:[#allocation5 + $0x8] sm:$0xff]
    %v45 = vld [vmem:[#allocation5 + $0x10] sm:$0xff]
    %v46 = vld [vmem:[#allocation5 + $0x18] sm:$0xff]
    %v47 = vld [vmem:[#allocation5 + $0x20] sm:$0xff]
    %v48 = vld [vmem:[#allocation5 + $0x28] sm:$0xff]
    %v49 = vld [vmem:[#allocation5 + $0x30] sm:$0xff]
    %v50 = vld [vmem:[#allocation5 + $0x38] sm:$0xff]
    %v51 = vld [vmem:[#allocation5 + $0x40] sm:$0xff]
    %v52 = vld [vmem:[#allocation5 + $0x48] sm:$0xff]
    %v53 = vld [vmem:[#allocation5 + $0x50] sm:$0xff]
    %v54 = vld [vmem:[#allocation5 + $0x58] sm:$0xff]
    %v55 = vld [vmem:[#allocation5 + $0x60] sm:$0xff]
    %v56 = vld [vmem:[#allocation5 + $0x68] sm:$0xff]
    %v57 = vld [vmem:[#allocation5 + $0x70] sm:$0xff]
    %v58 = vld [vmem:[#allocation5 + $0x78] sm:$0xff]
    %59 = vmatprep.subr.mxu0 0.0
    %60 = vmatpush1.msra.mxu0 %v43
    %61 = vmatprep.subr.mxu0 0.0
    %62 = vmatpush1.msra.mxu0 %v44
    %63 = vmatprep.subr.mxu0 0.0
    %64 = vmatpush1.msra.mxu0 %v45
    %65 = vmatprep.subr.mxu0 0.0
    %66 = vmatpush1.msra.mxu0 %v46
    %67 = vmatprep.subr.mxu0 0.0
    %68 = vmatpush1.msra.mxu0 %v47
    %69 = vmatprep.subr.mxu0 0.0
    %70 = vmatpush1.msra.mxu0 %v48
    %71 = vmatprep.subr.mxu0 0.0
    %72 = vmatpush1.msra.mxu0 %v49
    %73 = vmatprep.subr.mxu0 0.0
    %74 = vmatpush1.msra.mxu0 %v50
    %75 = vmatprep.subr.mxu0 0.0
    %76 = vmatpush1.msra.mxu0 %v51
    %77 = vmatprep.subr.mxu0 0.0
    %78 = vmatpush1.msra.mxu0 %v52
    %79 = vmatprep.subr.mxu0 0.0
    %80 = vmatpush1.msra.mxu0 %v53
    %81 = vmatprep.subr.mxu0 0.0
    %82 = vmatpush1.msra.mxu0 %v54
    %83 = vmatprep.subr.mxu0 0.0
    %84 = vmatpush1.msra.mxu0 %v55
    %85 = vmatprep.subr.mxu0 0.0
    %86 = vmatpush1.msra.mxu0 %v56
    %87 = vmatprep.subr.mxu0 0.0
    %88 = vmatpush1.msra.mxu0 %v57
    %89 = vmatprep.subr.mxu0 0.0
    %90 = vmatpush1.msra.mxu0 %v58
    %91 = vmatprep.subr.mxu0 0.0
    %92 = vmatpush1.msra.mxu0 0.0
    %93 = vmatprep.subr.mxu0 0.0
    %94 = vmatpush1.msra.mxu0 0.0
    %95 = vmatprep.subr.mxu0 0.0
    %96 = vmatpush1.msra.mxu0 0.0
    %97 = vmatprep.subr.mxu0 0.0
    %98 = vmatpush1.msra.mxu0 0.0
    %99 = vmatprep.subr.mxu0 0.0
    %100 = vmatpush1.msra.mxu0 0.0
    %101 = vmatprep.subr.mxu0 0.0
    %102 = vmatpush1.msra.mxu0 0.0
    %103 = vmatprep.subr.mxu0 0.0
    %104 = vmatpush1.msra.mxu0 0.0
    %105 = vmatprep.subr.mxu0 0.0
    %106 = vmatpush1.msra.mxu0 0.0
    %107 = vmatprep.subr.mxu0 0.0
    %108 = vmatpush1.msra.mxu0 0.0
    %109 = vmatprep.subr.mxu0 0.0
    %110 = vmatpush1.msra.mxu0 0.0
    %111 = vmatprep.subr.mxu0 0.0
    %112 = vmatpush1.msra.mxu0 0.0
    %113 = vmatprep.subr.mxu0 0.0
    %114 = vmatpush1.msra.mxu0 0.0
    %115 = vmatprep.subr.mxu0 0.0
    %116 = vmatpush1.msra.mxu0 0.0
    %117 = vmatprep.subr.mxu0 0.0
    %118 = vmatpush1.msra.mxu0 0.0
    %119 = vmatprep.subr.mxu0 0.0
    %120 = vmatpush1.msra.mxu0 0.0
    %121 = vmatprep.subr.mxu0 0.0
    %122 = vmatpush1.msra.mxu0 0.0
    %123 = vmatprep.mubr.f32.mxu0 0.0
    %124 = vmatmul.mubr.f32.gmra.mrb[0].mxu0 %v41
    %v125 = vpop.f32.mrb[0].mxu0
    %v126 = vadd.f32 0.0, %v125
    %v127 = vpop.f32.mrb[0].mxu0
    %128 = vdwg.mxu0
    %v129 = vmul.f32 %v41, %v41
    %130 = vmatprep.subr.mxu0 0.0
    %131 = vmatpush1.msra.mxu0 %v43
    %132 = vmatprep.subr.mxu0 0.0
    %133 = vmatpush1.msra.mxu0 %v44
    %134 = vmatprep.subr.mxu0 0.0
    %135 = vmatpush1.msra.mxu0 %v45
    %136 = vmatprep.subr.mxu0 0.0
    %137 = vmatpush1.msra.mxu0 %v46
    %138 = vmatprep.subr.mxu0 0.0
    %139 = vmatpush1.msra.mxu0 %v47
    %140 = vmatprep.subr.mxu0 0.0
    %141 = vmatpush1.msra.mxu0 %v48
    %142 = vmatprep.subr.mxu0 0.0
    %143 = vmatpush1.msra.mxu0 %v49
    %144 = vmatprep.subr.mxu0 0.0
    %145 = vmatpush1.msra.mxu0 %v50
    %146 = vmatprep.subr.mxu0 0.0
    %147 = vmatpush1.msra.mxu0 %v51
    %148 = vmatprep.subr.mxu0 0.0
    %149 = vmatpush1.msra.mxu0 %v52
    %150 = vmatprep.subr.mxu0 0.0
    %151 = vmatpush1.msra.mxu0 %v53
    %152 = vmatprep.subr.mxu0 0.0
    %153 = vmatpush1.msra.mxu0 %v54
    %154 = vmatprep.subr.mxu0 0.0
    %155 = vmatpush1.msra.mxu0 %v55
    %156 = vmatprep.subr.mxu0 0.0
    %157 = vmatpush1.msra.mxu0 %v56
    %158 = vmatprep.subr.mxu0 0.0
    %159 = vmatpush1.msra.mxu0 %v57
    %160 = vmatprep.subr.mxu0 0.0
    %161 = vmatpush1.msra.mxu0 %v58
    %162 = vmatprep.subr.mxu0 0.0
    %163 = vmatpush1.msra.mxu0 0.0
    %164 = vmatprep.subr.mxu0 0.0
    %165 = vmatpush1.msra.mxu0 0.0
    %166 = vmatprep.subr.mxu0 0.0
    %167 = vmatpush1.msra.mxu0 0.0
    %168 = vmatprep.subr.mxu0 0.0
    %169 = vmatpush1.msra.mxu0 0.0
    %170 = vmatprep.subr.mxu0 0.0
    %171 = vmatpush1.msra.mxu0 0.0
    %172 = vmatprep.subr.mxu0 0.0
    %173 = vmatpush1.msra.mxu0 0.0
    %174 = vmatprep.subr.mxu0 0.0
    %175 = vmatpush1.msra.mxu0 0.0
    %176 = vmatprep.subr.mxu0 0.0
    %177 = vmatpush1.msra.mxu0 0.0
    %178 = vmatprep.subr.mxu0 0.0
    %179 = vmatpush1.msra.mxu0 0.0
    %180 = vmatprep.subr.mxu0 0.0
    %181 = vmatpush1.msra.mxu0 0.0
    %182 = vmatprep.subr.mxu0 0.0
    %183 = vmatpush1.msra.mxu0 0.0
    %184 = vmatprep.subr.mxu0 0.0
    %185 = vmatpush1.msra.mxu0 0.0
    %186 = vmatprep.subr.mxu0 0.0
    %187 = vmatpush1.msra.mxu0 0.0
    %188 = vmatprep.subr.mxu0 0.0
    %189 = vmatpush1.msra.mxu0 0.0
    %190 = vmatprep.subr.mxu0 0.0
    %191 = vmatpush1.msra.mxu0 0.0
    %192 = vmatprep.subr.mxu0 0.0
    %193 = vmatpush1.msra.mxu0 0.0
    %194 = vmatprep.mubr.f32.mxu0 0.0
    %195 = vmatmul.mubr.f32.gmra.mrb[0].mxu0 %v129
    %v196 = vpop.f32.mrb[0].mxu0
    %v197 = vadd.f32 0.0, %v196
    %v198 = vpop.f32.mrb[0].mxu0
    %199 = vdwg.mxu0
    %v200 = vmul.f32 %v126, 0.03125
    %v201 = vmul.f32 %v197, 0.03125
    %v202 = vmul.f32 %v200, %v200
    %v203 = vsub.f32 %v201, %v202
    %v204 = vmax.f32 %v203, 0.0
    %v205 = vadd.f32 %v204, 1e-05
    %v206 = vrsqrt.pop %v205
    %v208 = vlaneseq
    %v209 = vshrl.u32 %v208, 7
    %v210 = vsub.s32 0, %v209
    %v211 = vrot.slane %v42, %v210
    %v213 = vmul.f32 %v206, %v211
    %v214 = vmul.f32 %v41, %v213
    %215 = vst [vmem:[#allocation7] sm:$0xff] %v214
    // Predicated region
    $region22: #{tpu_custom_call.1} parent=1 // pred_check
      _
    $region23: #{tpu_custom_call.1} parent=1 // pred_check_branch
      %217 = sbr.rel (0) target = $region25
    $region24: #{tpu_custom_call.1} parent=1 // pred_region
      %s219 = ssub.s32 128, 128
      %220 = vsyncadd [#allocation4], %s219
      %s222 = sshll.u32 [#allocation7], 4
      %s223 = int_to_ptr.vmem [resolvable:$true] %s222
      %225 = dma.vmem_to_hbm [thread:$0]  %s223, 128, %s3, [#allocation4]
    $region25: #{tpu_custom_call.1} parent=1 // pred_fallthru
      _
    // Predicated region
    $region26: #{tpu_custom_call.1} parent=1 // pred_check
      _
    $region27: #{tpu_custom_call.1} parent=1 // pred_check_branch
      %227 = sbr.rel (0) target = $region29
    $region28: #{tpu_custom_call.1} parent=1 // pred_region
      %228 = dma.done [#allocation4], 128
    $region29: #{tpu_custom_call.1} parent=1 // pred_fallthru
      _
    %229 = vsyncpa [#allocation3], 1
    %230 = vsyncpa [#allocation6], 1
    %231 = vsyncpa [#allocation4], 1

</llo_original>
